<compile_context>
chip_gen: v7x
topology: tpu7x:2x2x1
jax: 0.10.0
libtpu: 0.0.40
codegen_flags: <defaults>
</compile_context>

<pallas_src>
import functools

import jax
import jax.numpy as jnp
from jax.experimental import pallas as pl
from jax.experimental.pallas import tpu as pltpu


# ----------------------------------------------------------------------------
# Static model configuration (matches the module spec).
# ----------------------------------------------------------------------------
D = 128                         # padded lane width used everywhere in-kernel
VOCAB = (4, 3, 3, 2)            # Selection / ExplorationConst / Playout / ScoreBounds
EMB_SIZES = (8, 8, 8, 8)        # sum = 32
AGENT_HID = (32, 32)            # agent encoder MLP
GAME_F = 32                     # game feature count
GAME_HID = (32, 32)             # game encoder MLP
HEAD_HID = (64, 1)              # head MLP (last layer -> Tanh)
MULTI_SAMPLE_DROPOUT_COUNT = 3  # identity dropout -> single pass

assert GAME_F + 2 * sum(VOCAB) <= D
assert 2 * AGENT_HID[-1] + GAME_HID[-1] <= D
assert max(HEAD_HID) <= D

# Lane offsets (within the 128-lane layer-1 input) of the 8 categorical columns:
# layout = [ game (0..31) | p1 multihot (32..43) | p2 multihot (44..55) | zeros ]
_cum, _acc = [], 0
for _v in VOCAB:
    _cum.append(_acc)
    _acc += _v
ONEHOT_OFFS = tuple(GAME_F + c for c in _cum) + \
              tuple(GAME_F + sum(VOCAB) + c for c in _cum)


# ----------------------------------------------------------------------------
# Pallas kernel: embedding one-hot + 3 encoders + head, fully fused.
# ----------------------------------------------------------------------------
def utility_predictor_kernel(codes_ref, g_ref, w_ref, b_ref, out_ref):
    tb = g_ref.shape[0]

    # Layer-1 input: game features already sit in lanes [0, GAME_F); add the
    # multi-hot agent-code lanes (embedding tables are folded into W[0]).
    x = g_ref[...]                                           # (tb, 128) f32
    codes = codes_ref[...]                                   # (tb, 8) int32
    lane = jax.lax.broadcasted_iota(jnp.int32, (tb, D), 1)
    for c, off in enumerate(ONEHOT_OFFS):
        tgt = codes[:, c:c + 1] + off                        # (tb, 1) int32
        x = x + jnp.where(lane == tgt, 1.0, 0.0)

    biases = b_ref[...]                                      # (8, 128) f32

    def layer(h, i, act):
        z = jnp.dot(h, w_ref[i], preferred_element_type=jnp.float32)
        return act(z + biases[i:i + 1, :])

    relu = lambda v: jnp.maximum(v, 0.0)
    x = layer(x, 0, relu)        # fused embeddings + all three encoders, layer 1
    x = layer(x, 1, relu)        # all three encoders, layer 2 (block-diagonal)
    x = layer(x, 2, relu)        # head hidden
    x = layer(x, 3, jnp.tanh)    # head output (lane 0 is the prediction)

    out_ref[...] = x.astype(out_ref.dtype)


def utility_predictor_forward(player_1, player_2, game, w_slab, b_slab):
    """player_1/player_2: (B,4) int32 categorical codes, game: (B,GAME_F) f32."""
    B = game.shape[0]
    assert B % 8 == 0, "batch must be a multiple of 8 (sublane tile)"

    codes = jnp.concatenate([player_1, player_2], axis=1).astype(jnp.int32)  # (B,8)
    g_pad = jnp.pad(game.astype(jnp.float32), ((0, 0), (0, D - GAME_F)))     # (B,128)

    # Batch tile sized for v7x's smaller VMEM; pipelines + splits across TCs.
    tile_b = B if B <= 512 else 512
    assert B % tile_b == 0
    grid = (B // tile_b,)

    out = pl.pallas_call(
        utility_predictor_kernel,
        out_shape=jax.ShapeDtypeStruct((B, D), jnp.float32),
        grid=grid,
        in_specs=[
            pl.BlockSpec((tile_b, 8), lambda i: (i, 0)),        # agent codes
            pl.BlockSpec((tile_b, D), lambda i: (i, 0)),        # padded game feats
            pl.BlockSpec((4, D, D), lambda i: (0, 0, 0)),       # packed weights
            pl.BlockSpec((8, D), lambda i: (0, 0)),             # packed biases
        ],
        out_specs=pl.BlockSpec((tile_b, D), lambda i: (i, 0)),
        compiler_params=pltpu.CompilerParams(
            dimension_semantics=("parallel",)),
    )(codes, g_pad, w_slab, b_slab)

    return out[:, :HEAD_HID[-1]]   # lane-dense slab in-kernel, slice outside


# ----------------------------------------------------------------------------
# Parameter packing: block-diagonal, 128-lane-padded weight/bias slabs.
# ----------------------------------------------------------------------------
def _block_embed(embeds):
    """(sum(vocab), sum(emb)) block-diagonal embedding matrix."""
    rows = sum(int(t.shape[0]) for t in embeds)
    cols = sum(int(t.shape[1]) for t in embeds)
    E = jnp.zeros((rows, cols), jnp.float32)
    r = c = 0
    for t in embeds:
        E = E.at[r:r + t.shape[0], c:c + t.shape[1]].set(t)
        r += t.shape[0]
        c += t.shape[1]
    return E


def pack_params(embeds1, mlp_a1, embeds2, mlp_a2, mlp_game, mlp_head):
    a1w1, a1b1, a1w2, a1b2 = mlp_a1
    a2w1, a2b1, a2w2, a2b2 = mlp_a2
    gw1, gb1, gw2, gb2 = mlp_game
    fw1, fb1, fw2, fb2 = mlp_head

    ah = a1w1.shape[1]          # agent hidden (32)
    gh = gw1.shape[1]           # game hidden (32)
    hh = fw1.shape[1]           # head hidden (64)
    ho = fw2.shape[1]           # head output (1)
    nv = sum(VOCAB)             # 12
    hi = lax_precision = jax.lax.Precision.HIGHEST

    # Hidden-feature column layout (all layers): [agent1 | agent2 | game | pad]
    # Layer 1: embeddings folded into the agent blocks (exact: one-hot select).
    W1 = jnp.zeros((D, D), jnp.float32)
    W1 = W1.at[0:GAME_F, 2 * ah:2 * ah + gh].set(gw1)
    W1 = W1.at[GAME_F:GAME_F + nv, 0:ah].set(
        jnp.dot(_block_embed(embeds1), a1w1, precision=hi))
    W1 = W1.at[GAME_F + nv:GAME_F + 2 * nv, ah:2 * ah].set(
        jnp.dot(_block_embed(embeds2), a2w1, precision=hi))
    b1 = jnp.zeros((D,), jnp.float32)
    b1 = b1.at[0:ah].set(a1b1[0]).at[ah:2 * ah].set(a2b1[0]) \
           .at[2 * ah:2 * ah + gh].set(gb1[0])

    # Layer 2: plain block-diagonal.
    W2 = jnp.zeros((D, D), jnp.float32)
    W2 = W2.at[0:ah, 0:ah].set(a1w2)
    W2 = W2.at[ah:2 * ah, ah:2 * ah].set(a2w2)
    W2 = W2.at[2 * ah:2 * ah + gh, 2 * ah:2 * ah + gh].set(gw2)
    b2 = jnp.zeros((D,), jnp.float32)
    b2 = b2.at[0:ah].set(a1b2[0]).at[ah:2 * ah].set(a2b2[0]) \
           .at[2 * ah:2 * ah + gh].set(gb2[0])

    # Head hidden + output, zero-padded to 128 lanes.
    head_in = fw1.shape[0]
    W3 = jnp.zeros((D, D), jnp.float32).at[0:head_in, 0:hh].set(fw1)
    b3 = jnp.zeros((D,), jnp.float32).at[0:hh].set(fb1[0])
    W4 = jnp.zeros((D, D), jnp.float32).at[0:hh, 0:ho].set(fw2)
    b4 = jnp.zeros((D,), jnp.float32).at[0:ho].set(fb2[0])

    w_slab = jnp.stack([W1, W2, W3, W4], axis=0)        # (4, 128, 128)
    b_slab = jnp.zeros((8, D), jnp.float32)
    b_slab = b_slab.at[0].set(b1).at[1].set(b2).at[2].set(b3).at[3].set(b4)
    return w_slab, b_slab


# ----------------------------------------------------------------------------
# Deterministic parameter construction (shapes from the module __init__).
# ----------------------------------------------------------------------------
def make_linear(key, fan_in, fan_out):
    k_w, k_b = jax.random.split(key)
    bound = 1.0 / jnp.sqrt(jnp.float32(fan_in))
    w = jax.random.uniform(k_w, (fan_in, fan_out), jnp.float32, -bound, bound)
    b = jax.random.uniform(k_b, (1, fan_out), jnp.float32, -bound, bound)
    return w, b


def make_agent_encoder_params(key, embedding_sizes, mlp_layer_sizes):
    keys = jax.random.split(key, 4 + len(mlp_layer_sizes))
    embeds = [
        jax.random.normal(keys[i], (VOCAB[i], embedding_sizes[i]), jnp.float32)
        for i in range(4)
    ]
    mlp = []
    in_dim = sum(embedding_sizes)
    for i, out_dim in enumerate(mlp_layer_sizes):
        w, b = make_linear(keys[4 + i], in_dim, out_dim)
        mlp.extend([w, b])
        in_dim = out_dim
    return embeds, mlp


def make_mlp_params(key, in_dim, layer_sizes):
    keys = jax.random.split(key, len(layer_sizes))
    mlp = []
    for i, out_dim in enumerate(layer_sizes):
        w, b = make_linear(keys[i], in_dim, out_dim)
        mlp.extend([w, b])
        in_dim = out_dim
    return mlp


def embed_agent(agent_ints, embeds):
    parts = [jnp.take(embeds[i], agent_ints[:, i], axis=0) for i in range(4)]
    return jnp.concatenate(parts, axis=1)


# ----------------------------------------------------------------------------
# Pure-JAX reference (gather -> encoders -> head), for correctness check.
# ----------------------------------------------------------------------------
def reference_forward(e1, e2, g, params):
    (a1w1, a1b1, a1w2, a1b2,
     a2w1, a2b1, a2w2, a2b2,
     gw1, gb1, gw2, gb2,
     fw1, fb1, fw2, fb2) = params
    relu = lambda v: jnp.maximum(v, 0.0)
    h1 = relu(relu(e1 @ a1w1 + a1b1) @ a1w2 + a1b2)
    h2 = relu(relu(e2 @ a2w1 + a2b1) @ a2w2 + a2b2)
    hg = relu(relu(g @ gw1 + gb1) @ gw2 + gb2)
    x = jnp.concatenate([h1, h2, hg], axis=1)
    x = relu(x @ fw1 + fb1)
    return jnp.tanh(x @ fw2 + fb2)


if __name__ == "__main__":
    B = 8
    key = jax.random.PRNGKey(0)
    k_a1, k_a2, k_g, k_head, k_p1, k_p2, k_game = jax.random.split(key, 7)

    # Parameters (deterministic, synthetic) + packed slabs.
    embeds1, mlp_a1 = make_agent_encoder_params(k_a1, EMB_SIZES, AGENT_HID)
    embeds2, mlp_a2 = make_agent_encoder_params(k_a2, EMB_SIZES, AGENT_HID)
    mlp_game = make_mlp_params(k_g, GAME_F, GAME_HID)
    head_in = AGENT_HID[-1] * 2 + GAME_HID[-1]
    mlp_head = make_mlp_params(k_head, head_in, HEAD_HID)
    w_slab, b_slab = pack_params(embeds1, mlp_a1, embeds2, mlp_a2, mlp_game, mlp_head)

    # Inputs: categorical agent descriptors + dense game features.
    maxvals = jnp.array(VOCAB, dtype=jnp.int32)
    player_1 = jax.random.randint(k_p1, (B, 4), 0, 1000, dtype=jnp.int32) % maxvals
    player_2 = jax.random.randint(k_p2, (B, 4), 0, 1000, dtype=jnp.int32) % maxvals
    game = jax.random.normal(k_game, (B, GAME_F), jnp.float32)

    # Multi-sample dropout is identity at inference: averaging
    # MULTI_SAMPLE_DROPOUT_COUNT identical samples == one fused pass.
    forward = jax.jit(utility_predictor_forward)
    averaged_predictions = forward(player_1, player_2, game, w_slab, b_slab)
    averaged_predictions = jax.block_until_ready(averaged_predictions)

    # Correctness check against pure-JAX reference.
    e1 = embed_agent(player_1, embeds1)
    e2 = embed_agent(player_2, embeds2)
    params = tuple(mlp_a1 + mlp_a2 + mlp_game + mlp_head)
    ref = reference_forward(e1, e2, game, params)
    assert averaged_predictions.shape == (B, HEAD_HID[-1])
    assert jnp.allclose(averaged_predictions, ref, atol=5e-5, rtol=5e-5)

    print("KERNEL_OK")
</pallas_src>

<mosaic_0001>
module attributes {stable_mosaic.version = 11 : i64} {
  func.func @utility_predictor_kernel(%arg0: i32, %arg1: memref<8x8xi32, #tpu.memory_space<vmem>>, %arg2: memref<8x128xf32, #tpu.memory_space<vmem>>, %arg3: memref<4x128x128xf32, #tpu.memory_space<vmem>>, %arg4: memref<8x128xf32, #tpu.memory_space<vmem>>, %arg5: memref<8x128xf32, #tpu.memory_space<vmem>>) attributes {dimension_semantics = [#tpu.dimension_semantics<parallel>], iteration_bounds = array<i64: 1>, scalar_prefetch = 0 : i64, scratch_operands = 0 : i64, tpu.core_type = #tpu.core_type<tc>, window_params = [{transform_indices = @transform_0, window_bounds = array<i64: 8, 8>}, {transform_indices = @transform_1, window_bounds = array<i64: 8, 128>}, {pipeline_mode = #tpu.pipeline_mode<synchronous>, transform_indices = @transform_2, window_bounds = array<i64: 4, 128, 128>}, {pipeline_mode = #tpu.pipeline_mode<synchronous>, transform_indices = @transform_3, window_bounds = array<i64: 8, 128>}, {transform_indices = @transform_4, window_bounds = array<i64: 8, 128>}]} {
    %c0 = arith.constant 0 : index
    %c0_0 = arith.constant 0 : index
    %0 = vector.load %arg2[%c0, %c0_0] : memref<8x128xf32, #tpu.memory_space<vmem>>, vector<8x128xf32>
    %c0_1 = arith.constant 0 : index
    %c0_2 = arith.constant 0 : index
    %1 = vector.load %arg1[%c0_1, %c0_2] : memref<8x8xi32, #tpu.memory_space<vmem>>, vector<8x8xi32>
    %2 = tpu.iota {dimensions = array<i32: 1>} : vector<8x128xi32>
    %3 = vector.extract_strided_slice %1 {offsets = [0, 0], sizes = [8, 1], strides = [1, 1]} : vector<8x8xi32> to vector<8x1xi32>
    %c32_i32 = arith.constant 32 : i32
    %4 = vector.broadcast %c32_i32 : i32 to vector<8x1xi32>
    %5 = arith.addi %3, %4 : vector<8x1xi32>
    %6 = vector.broadcast %5 : vector<8x1xi32> to vector<8x128xi32>
    %7 = arith.cmpi eq, %2, %6 : vector<8x128xi32>
    %cst = arith.constant 1.000000e+00 : f32
    %cst_3 = arith.constant 0.000000e+00 : f32
    %8 = vector.broadcast %cst : f32 to vector<8x128xf32>
    %9 = vector.broadcast %cst_3 : f32 to vector<8x128xf32>
    %10 = arith.select %7, %8, %9 : vector<8x128xi1>, vector<8x128xf32>
    %11 = arith.addf %0, %10 : vector<8x128xf32>
    %12 = vector.extract_strided_slice %1 {offsets = [0, 1], sizes = [8, 1], strides = [1, 1]} : vector<8x8xi32> to vector<8x1xi32>
    %c36_i32 = arith.constant 36 : i32
    %13 = vector.broadcast %c36_i32 : i32 to vector<8x1xi32>
    %14 = arith.addi %12, %13 : vector<8x1xi32>
    %15 = vector.broadcast %14 : vector<8x1xi32> to vector<8x128xi32>
    %16 = arith.cmpi eq, %2, %15 : vector<8x128xi32>
    %cst_4 = arith.constant 1.000000e+00 : f32
    %cst_5 = arith.constant 0.000000e+00 : f32
    %17 = vector.broadcast %cst_4 : f32 to vector<8x128xf32>
    %18 = vector.broadcast %cst_5 : f32 to vector<8x128xf32>
    %19 = arith.select %16, %17, %18 : vector<8x128xi1>, vector<8x128xf32>
    %20 = arith.addf %11, %19 : vector<8x128xf32>
    %21 = vector.extract_strided_slice %1 {offsets = [0, 2], sizes = [8, 1], strides = [1, 1]} : vector<8x8xi32> to vector<8x1xi32>
    %c39_i32 = arith.constant 39 : i32
    %22 = vector.broadcast %c39_i32 : i32 to vector<8x1xi32>
    %23 = arith.addi %21, %22 : vector<8x1xi32>
    %24 = vector.broadcast %23 : vector<8x1xi32> to vector<8x128xi32>
    %25 = arith.cmpi eq, %2, %24 : vector<8x128xi32>
    %cst_6 = arith.constant 1.000000e+00 : f32
    %cst_7 = arith.constant 0.000000e+00 : f32
    %26 = vector.broadcast %cst_6 : f32 to vector<8x128xf32>
    %27 = vector.broadcast %cst_7 : f32 to vector<8x128xf32>
    %28 = arith.select %25, %26, %27 : vector<8x128xi1>, vector<8x128xf32>
    %29 = arith.addf %20, %28 : vector<8x128xf32>
    %30 = vector.extract_strided_slice %1 {offsets = [0, 3], sizes = [8, 1], strides = [1, 1]} : vector<8x8xi32> to vector<8x1xi32>
    %c42_i32 = arith.constant 42 : i32
    %31 = vector.broadcast %c42_i32 : i32 to vector<8x1xi32>
    %32 = arith.addi %30, %31 : vector<8x1xi32>
    %33 = vector.broadcast %32 : vector<8x1xi32> to vector<8x128xi32>
    %34 = arith.cmpi eq, %2, %33 : vector<8x128xi32>
    %cst_8 = arith.constant 1.000000e+00 : f32
    %cst_9 = arith.constant 0.000000e+00 : f32
    %35 = vector.broadcast %cst_8 : f32 to vector<8x128xf32>
    %36 = vector.broadcast %cst_9 : f32 to vector<8x128xf32>
    %37 = arith.select %34, %35, %36 : vector<8x128xi1>, vector<8x128xf32>
    %38 = arith.addf %29, %37 : vector<8x128xf32>
    %39 = vector.extract_strided_slice %1 {offsets = [0, 4], sizes = [8, 1], strides = [1, 1]} : vector<8x8xi32> to vector<8x1xi32>
    %c44_i32 = arith.constant 44 : i32
    %40 = vector.broadcast %c44_i32 : i32 to vector<8x1xi32>
    %41 = arith.addi %39, %40 : vector<8x1xi32>
    %42 = vector.broadcast %41 : vector<8x1xi32> to vector<8x128xi32>
    %43 = arith.cmpi eq, %2, %42 : vector<8x128xi32>
    %cst_10 = arith.constant 1.000000e+00 : f32
    %cst_11 = arith.constant 0.000000e+00 : f32
    %44 = vector.broadcast %cst_10 : f32 to vector<8x128xf32>
    %45 = vector.broadcast %cst_11 : f32 to vector<8x128xf32>
    %46 = arith.select %43, %44, %45 : vector<8x128xi1>, vector<8x128xf32>
    %47 = arith.addf %38, %46 : vector<8x128xf32>
    %48 = vector.extract_strided_slice %1 {offsets = [0, 5], sizes = [8, 1], strides = [1, 1]} : vector<8x8xi32> to vector<8x1xi32>
    %c48_i32 = arith.constant 48 : i32
    %49 = vector.broadcast %c48_i32 : i32 to vector<8x1xi32>
    %50 = arith.addi %48, %49 : vector<8x1xi32>
    %51 = vector.broadcast %50 : vector<8x1xi32> to vector<8x128xi32>
    %52 = arith.cmpi eq, %2, %51 : vector<8x128xi32>
    %cst_12 = arith.constant 1.000000e+00 : f32
    %cst_13 = arith.constant 0.000000e+00 : f32
    %53 = vector.broadcast %cst_12 : f32 to vector<8x128xf32>
    %54 = vector.broadcast %cst_13 : f32 to vector<8x128xf32>
    %55 = arith.select %52, %53, %54 : vector<8x128xi1>, vector<8x128xf32>
    %56 = arith.addf %47, %55 : vector<8x128xf32>
    %57 = vector.extract_strided_slice %1 {offsets = [0, 6], sizes = [8, 1], strides = [1, 1]} : vector<8x8xi32> to vector<8x1xi32>
    %c51_i32 = arith.constant 51 : i32
    %58 = vector.broadcast %c51_i32 : i32 to vector<8x1xi32>
    %59 = arith.addi %57, %58 : vector<8x1xi32>
    %60 = vector.broadcast %59 : vector<8x1xi32> to vector<8x128xi32>
    %61 = arith.cmpi eq, %2, %60 : vector<8x128xi32>
    %cst_14 = arith.constant 1.000000e+00 : f32
    %cst_15 = arith.constant 0.000000e+00 : f32
    %62 = vector.broadcast %cst_14 : f32 to vector<8x128xf32>
    %63 = vector.broadcast %cst_15 : f32 to vector<8x128xf32>
    %64 = arith.select %61, %62, %63 : vector<8x128xi1>, vector<8x128xf32>
    %65 = arith.addf %56, %64 : vector<8x128xf32>
    %66 = vector.extract_strided_slice %1 {offsets = [0, 7], sizes = [8, 1], strides = [1, 1]} : vector<8x8xi32> to vector<8x1xi32>
    %c54_i32 = arith.constant 54 : i32
    %67 = vector.broadcast %c54_i32 : i32 to vector<8x1xi32>
    %68 = arith.addi %66, %67 : vector<8x1xi32>
    %69 = vector.broadcast %68 : vector<8x1xi32> to vector<8x128xi32>
    %70 = arith.cmpi eq, %2, %69 : vector<8x128xi32>
    %cst_16 = arith.constant 1.000000e+00 : f32
    %cst_17 = arith.constant 0.000000e+00 : f32
    %71 = vector.broadcast %cst_16 : f32 to vector<8x128xf32>
    %72 = vector.broadcast %cst_17 : f32 to vector<8x128xf32>
    %73 = arith.select %70, %71, %72 : vector<8x128xi1>, vector<8x128xf32>
    %74 = arith.addf %65, %73 : vector<8x128xf32>
    %c0_18 = arith.constant 0 : index
    %c0_19 = arith.constant 0 : index
    %75 = vector.load %arg4[%c0_18, %c0_19] : memref<8x128xf32, #tpu.memory_space<vmem>>, vector<8x128xf32>
    %c0_20 = arith.constant 0 : index
    %c0_21 = arith.constant 0 : index
    %c0_22 = arith.constant 0 : index
    %76 = vector.load %arg3[%c0_20, %c0_21, %c0_22] : memref<4x128x128xf32, #tpu.memory_space<vmem>>, vector<1x128x128xf32>
    %77 = vector.shape_cast %76 : vector<1x128x128xf32> to vector<128x128xf32>
    %cst_23 = arith.constant dense<0.000000e+00> : vector<8x128xf32>
    %78 = tpu.matmul %74, %77, %cst_23 {dimension_numbers = #tpu.dot_dimension_numbers<[1], [0], [0], [1], [0, 0, 1, 1], [], []>} : vector<8x128xf32>, vector<128x128xf32>, vector<8x128xf32> -> vector<8x128xf32>
    %79 = vector.extract_strided_slice %75 {offsets = [0, 0], sizes = [1, 128], strides = [1, 1]} : vector<8x128xf32> to vector<1x128xf32>
    %80 = vector.broadcast %79 : vector<1x128xf32> to vector<8x128xf32>
    %81 = arith.addf %78, %80 : vector<8x128xf32>
    %cst_24 = arith.constant 0.000000e+00 : f32
    %82 = vector.broadcast %cst_24 : f32 to vector<8x128xf32>
    %83 = arith.maximumf %81, %82 : vector<8x128xf32>
    %c1 = arith.constant 1 : index
    %c0_25 = arith.constant 0 : index
    %c0_26 = arith.constant 0 : index
    %84 = vector.load %arg3[%c1, %c0_25, %c0_26] : memref<4x128x128xf32, #tpu.memory_space<vmem>>, vector<1x128x128xf32>
    %85 = vector.shape_cast %84 : vector<1x128x128xf32> to vector<128x128xf32>
    %cst_27 = arith.constant dense<0.000000e+00> : vector<8x128xf32>
    %86 = tpu.matmul %83, %85, %cst_27 {dimension_numbers = #tpu.dot_dimension_numbers<[1], [0], [0], [1], [0, 0, 1, 1], [], []>} : vector<8x128xf32>, vector<128x128xf32>, vector<8x128xf32> -> vector<8x128xf32>
    %87 = vector.extract_strided_slice %75 {offsets = [1, 0], sizes = [1, 128], strides = [1, 1]} : vector<8x128xf32> to vector<1x128xf32>
    %88 = vector.broadcast %87 : vector<1x128xf32> to vector<8x128xf32>
    %89 = arith.addf %86, %88 : vector<8x128xf32>
    %cst_28 = arith.constant 0.000000e+00 : f32
    %90 = vector.broadcast %cst_28 : f32 to vector<8x128xf32>
    %91 = arith.maximumf %89, %90 : vector<8x128xf32>
    %c2 = arith.constant 2 : index
    %c0_29 = arith.constant 0 : index
    %c0_30 = arith.constant 0 : index
    %92 = vector.load %arg3[%c2, %c0_29, %c0_30] : memref<4x128x128xf32, #tpu.memory_space<vmem>>, vector<1x128x128xf32>
    %93 = vector.shape_cast %92 : vector<1x128x128xf32> to vector<128x128xf32>
    %cst_31 = arith.constant dense<0.000000e+00> : vector<8x128xf32>
    %94 = tpu.matmul %91, %93, %cst_31 {dimension_numbers = #tpu.dot_dimension_numbers<[1], [0], [0], [1], [0, 0, 1, 1], [], []>} : vector<8x128xf32>, vector<128x128xf32>, vector<8x128xf32> -> vector<8x128xf32>
    %95 = vector.extract_strided_slice %75 {offsets = [2, 0], sizes = [1, 128], strides = [1, 1]} : vector<8x128xf32> to vector<1x128xf32>
    %96 = vector.broadcast %95 : vector<1x128xf32> to vector<8x128xf32>
    %97 = arith.addf %94, %96 : vector<8x128xf32>
    %cst_32 = arith.constant 0.000000e+00 : f32
    %98 = vector.broadcast %cst_32 : f32 to vector<8x128xf32>
    %99 = arith.maximumf %97, %98 : vector<8x128xf32>
    %c3 = arith.constant 3 : index
    %c0_33 = arith.constant 0 : index
    %c0_34 = arith.constant 0 : index
    %100 = vector.load %arg3[%c3, %c0_33, %c0_34] : memref<4x128x128xf32, #tpu.memory_space<vmem>>, vector<1x128x128xf32>
    %101 = vector.shape_cast %100 : vector<1x128x128xf32> to vector<128x128xf32>
    %cst_35 = arith.constant dense<0.000000e+00> : vector<8x128xf32>
    %102 = tpu.matmul %99, %101, %cst_35 {dimension_numbers = #tpu.dot_dimension_numbers<[1], [0], [0], [1], [0, 0, 1, 1], [], []>} : vector<8x128xf32>, vector<128x128xf32>, vector<8x128xf32> -> vector<8x128xf32>
    %103 = vector.extract_strided_slice %75 {offsets = [3, 0], sizes = [1, 128], strides = [1, 1]} : vector<8x128xf32> to vector<1x128xf32>
    %104 = vector.broadcast %103 : vector<1x128xf32> to vector<8x128xf32>
    %105 = arith.addf %102, %104 : vector<8x128xf32>
    %106 = math.tanh %105 : vector<8x128xf32>
    %c0_36 = arith.constant 0 : index
    %c0_37 = arith.constant 0 : index
    %107 = vector.load %arg5[%c0_36, %c0_37] : memref<8x128xf32, #tpu.memory_space<vmem>>, vector<8x128xf32>
    tpu.vector_store %arg5[%c0_36, %c0_37], %106 {strides = array<i32>} : memref<8x128xf32, #tpu.memory_space<vmem>>, vector<8x128xf32>,
    return
  }
  func.func @transform_0(%arg0: i32) -> (i32, i32) {
    %c0_i32 = arith.constant 0 : i32
    %c0_i32_0 = arith.constant 0 : i32
    return %arg0, %c0_i32 : i32, i32
  }
  func.func @transform_1(%arg0: i32) -> (i32, i32) {
    %c0_i32 = arith.constant 0 : i32
    %c0_i32_0 = arith.constant 0 : i32
    return %arg0, %c0_i32 : i32, i32
  }
  func.func @transform_2(%arg0: i32) -> (i32, i32, i32) {
    %c0_i32 = arith.constant 0 : i32
    %c0_i32_0 = arith.constant 0 : i32
    %c0_i32_1 = arith.constant 0 : i32
    %c0_i32_2 = arith.constant 0 : i32
    return %c0_i32, %c0_i32_0, %c0_i32_1 : i32, i32, i32
  }
  func.func @transform_3(%arg0: i32) -> (i32, i32) {
    %c0_i32 = arith.constant 0 : i32
    %c0_i32_0 = arith.constant 0 : i32
    %c0_i32_1 = arith.constant 0 : i32
    return %c0_i32, %c0_i32_0 : i32, i32
  }
  func.func @transform_4(%arg0: i32) -> (i32, i32) {
    %c0_i32 = arith.constant 0 : i32
    %c0_i32_0 = arith.constant 0 : i32
    return %arg0, %c0_i32 : i32, i32
  }
}

</mosaic_0001>

<llo_original>
// kernel: utility_predictor_forward.1
$region0: #{utility_predictor_forward.1}
  #allocation0 [shape = 'u32[]', space=smem, size = 0x4, offset = 0x4, fixed_abs, tag = 'smem constant byte address 0x4 - core index']
  #allocation1 [shape = 'u32[144,128]{1,0:T(1,128)}', space=vmem, size = 0x12000, scoped, tag = 'internal scratch']
  %s0 = inlined_call_operand.vmem [shape: s32[8,8], index: 0, kind: input, shape index: {}]
  %s1 = inlined_call_operand.vmem [shape: f32[8,128], index: 1, kind: input, shape index: {}]
  %s2 = inlined_call_operand.hbm [shape: f32[4,128,128], index: 2, kind: input, shape index: {}]
  %s3 = inlined_call_operand.vmem [shape: f32[8,128], index: 3, kind: input, shape index: {}]
  %s4 = inlined_call_operand.vmem [shape: f32[8,128], index: 4, kind: output, shape index: {}]
  %s5 = sld [smem:[#allocation0]]
  $region30: #{utility_predictor_forward.1} parent=0
    _
  %s7 = ssub.s32 1, %s5
  %s8 = scalar_select 0, %s7, %s5
  $region1: #{utility_predictor_forward.1} parent=0
    #allocation2 [shape = 'u8[262144]{0}', space=vmem, size = 0x40000, scoped, tag = 'input window, operand 2, single buffered']
    #allocation3 [shape = 's32[1]{0}', space=sflag, size = 0x4, scoped, tag = 'scoped memory for utility_predictor_forward.1']
    %9 = vsyncpa [#allocation3], 0
    // Predicated region
    $region2: #{utility_predictor_forward.1} parent=1 // pred_check
      _
    $region3: #{utility_predictor_forward.1} parent=1 // pred_check_branch
      %11 = sbr.rel (0) target = $region5
    $region4: #{utility_predictor_forward.1} parent=1 // pred_region
      _
    $region5: #{utility_predictor_forward.1} parent=1 // pred_fallthru
      _
    // Predicated region
    $region6: #{utility_predictor_forward.1} parent=1 // pred_check
      _
    $region7: #{utility_predictor_forward.1} parent=1 // pred_check_branch
      %13 = sbr.rel (0) target = $region9
    $region8: #{utility_predictor_forward.1} parent=1 // pred_region
      _
    $region9: #{utility_predictor_forward.1} parent=1 // pred_fallthru
      _
    // Predicated region
    $region10: #{utility_predictor_forward.1} parent=1 // pred_check
      _
    $region11: #{utility_predictor_forward.1} parent=1 // pred_check_branch
      %15 = sbr.rel (0) target = $region13
    $region12: #{utility_predictor_forward.1} parent=1 // pred_region
      %s17 = ssub.s32 8192, 8192
      %18 = vsyncadd [#allocation3], %s17
      %s19 = sshll.u32 [#allocation2], 4
      %s20 = int_to_ptr.vmem [resolvable:$true] %s19
      %25 = dma.hbm_to_vmem [thread:$0]  %s2, 8192, %s20, [#allocation3], 128, 128, 8
    $region13: #{utility_predictor_forward.1} parent=1 // pred_fallthru
      _
    // Predicated region
    $region14: #{utility_predictor_forward.1} parent=1 // pred_check
      _
    $region15: #{utility_predictor_forward.1} parent=1 // pred_check_branch
      %27 = sbr.rel (0) target = $region17
    $region16: #{utility_predictor_forward.1} parent=1 // pred_region
      _
    $region17: #{utility_predictor_forward.1} parent=1 // pred_fallthru
      _
    // Predicated region
    $region18: #{utility_predictor_forward.1} parent=1 // pred_check
      _
    $region19: #{utility_predictor_forward.1} parent=1 // pred_check_branch
      %29 = sbr.rel (0) target = $region21
    $region20: #{utility_predictor_forward.1} parent=1 // pred_region
      %30 = dma.done [#allocation3], 8192
    $region21: #{utility_predictor_forward.1} parent=1 // pred_fallthru
      _
    %v31 = vld [vmem:[%s1] sm:$0xff]
    %v32 = vld [vmem:[%s0] sm:$0xff]
    %v33 = vlaneseq
    %v34 = vand.u32 %v33, 127
    %v35 = vadd.s32 %v32, 32
    %36 = vset.pattern.permute.xlu0 0
    %37 = vperm.xlu0 %36, %v35
    %v38 = vpop.permute.xlu0 %37
    %vm39 = vcmp.eq.s32.totalorder %v34, %v38
    %v40 = vsel %vm39, 1.0, 0.0
    %v41 = vadd.f32 %v31, %v40
    %v42 = vadd.s32 %v32, 36
    %43 = vset.pattern.permute.xlu0 1
    %44 = vperm.xlu0 %43, %v42
    %v45 = vpop.permute.xlu0 %44
    %vm46 = vcmp.eq.s32.totalorder %v34, %v45
    %v47 = vsel %vm46, 1.0, 0.0
    %v48 = vadd.f32 %v41, %v47
    %v49 = vadd.s32 %v32, 39
    %50 = vset.pattern.permute.xlu0 2
    %51 = vperm.xlu0 %50, %v49
    %v52 = vpop.permute.xlu0 %51
    %vm53 = vcmp.eq.s32.totalorder %v34, %v52
    %v54 = vsel %vm53, 1.0, 0.0
    %v55 = vadd.f32 %v48, %v54
    %v56 = vadd.s32 %v32, 42
    %57 = vset.pattern.permute.xlu0 3
    %58 = vperm.xlu0 %57, %v56
    %v59 = vpop.permute.xlu0 %58
    %vm60 = vcmp.eq.s32.totalorder %v34, %v59
    %v61 = vsel %vm60, 1.0, 0.0
    %v62 = vadd.f32 %v55, %v61
    %v63 = vadd.s32 %v32, 44
    %64 = vset.pattern.permute.xlu0 4
    %65 = vperm.xlu0 %64, %v63
    %v66 = vpop.permute.xlu0 %65
    %vm67 = vcmp.eq.s32.totalorder %v34, %v66
    %v68 = vsel %vm67, 1.0, 0.0
    %v69 = vadd.f32 %v62, %v68
    %v70 = vadd.s32 %v32, 48
    %71 = vset.pattern.permute.xlu0 5
    %72 = vperm.xlu0 %71, %v70
    %v73 = vpop.permute.xlu0 %72
    %vm74 = vcmp.eq.s32.totalorder %v34, %v73
    %v75 = vsel %vm74, 1.0, 0.0
    %v76 = vadd.f32 %v69, %v75
    %v77 = vadd.s32 %v32, 51
    %78 = vset.pattern.permute.xlu0 6
    %79 = vperm.xlu0 %78, %v77
    %v80 = vpop.permute.xlu0 %79
    %vm81 = vcmp.eq.s32.totalorder %v34, %v80
    %v82 = vsel %vm81, 1.0, 0.0
    %v83 = vadd.f32 %v76, %v82
    %v84 = vadd.s32 %v32, 54
    %85 = vset.pattern.permute.xlu0 7
    %86 = vperm.xlu0 %85, %v84
    %v87 = vpop.permute.xlu0 %86
    %vm88 = vcmp.eq.s32.totalorder %v34, %v87
    %v89 = vsel %vm88, 1.0, 0.0
    %v90 = vadd.f32 %v83, %v89
    %v91 = vld [vmem:[%s3] sm:$0xff]
    %v92 = vld [vmem:[#allocation2] sm:$0xff]
    %v93 = vld [vmem:[#allocation2 + $0x8] sm:$0xff]
    %v94 = vld [vmem:[#allocation2 + $0x10] sm:$0xff]
    %v95 = vld [vmem:[#allocation2 + $0x18] sm:$0xff]
    %v96 = vld [vmem:[#allocation2 + $0x20] sm:$0xff]
    %v97 = vld [vmem:[#allocation2 + $0x28] sm:$0xff]
    %v98 = vld [vmem:[#allocation2 + $0x30] sm:$0xff]
    %v99 = vld [vmem:[#allocation2 + $0x38] sm:$0xff]
    %v100 = vld [vmem:[#allocation2 + $0x40] sm:$0xff]
    %v101 = vld [vmem:[#allocation2 + $0x48] sm:$0xff]
    %v102 = vld [vmem:[#allocation2 + $0x50] sm:$0xff]
    %v103 = vld [vmem:[#allocation2 + $0x58] sm:$0xff]
    %v104 = vld [vmem:[#allocation2 + $0x60] sm:$0xff]
    %v105 = vld [vmem:[#allocation2 + $0x68] sm:$0xff]
    %v106 = vld [vmem:[#allocation2 + $0x70] sm:$0xff]
    %v107 = vld [vmem:[#allocation2 + $0x78] sm:$0xff]
    %v108 = vlaneseq
    %v109 = vshrl.u32 %v108, 7
    %v110 = vsub.s32 0, %v109
    %v111 = vrot.slane %v91, %v110
    %112 = vmatprep.subr.mxu0 0.0
    %113 = vmatpush1.msra.mxu0 %v92
    %114 = vmatprep.subr.mxu0 0.0
    %115 = vmatpush1.msra.mxu0 %v93
    %116 = vmatprep.subr.mxu0 0.0
    %117 = vmatpush1.msra.mxu0 %v94
    %118 = vmatprep.subr.mxu0 0.0
    %119 = vmatpush1.msra.mxu0 %v95
    %120 = vmatprep.subr.mxu0 0.0
    %121 = vmatpush1.msra.mxu0 %v96
    %122 = vmatprep.subr.mxu0 0.0
    %123 = vmatpush1.msra.mxu0 %v97
    %124 = vmatprep.subr.mxu0 0.0
    %125 = vmatpush1.msra.mxu0 %v98
    %126 = vmatprep.subr.mxu0 0.0
    %127 = vmatpush1.msra.mxu0 %v99
    %128 = vmatprep.subr.mxu0 0.0
    %129 = vmatpush1.msra.mxu0 %v100
    %130 = vmatprep.subr.mxu0 0.0
    %131 = vmatpush1.msra.mxu0 %v101
    %132 = vmatprep.subr.mxu0 0.0
    %133 = vmatpush1.msra.mxu0 %v102
    %134 = vmatprep.subr.mxu0 0.0
    %135 = vmatpush1.msra.mxu0 %v103
    %136 = vmatprep.subr.mxu0 0.0
    %137 = vmatpush1.msra.mxu0 %v104
    %138 = vmatprep.subr.mxu0 0.0
    %139 = vmatpush1.msra.mxu0 %v105
    %140 = vmatprep.subr.mxu0 0.0
    %141 = vmatpush1.msra.mxu0 %v106
    %142 = vmatprep.subr.mxu0 0.0
    %143 = vmatpush1.msra.mxu0 %v107
    %144 = vmatprep.subr.mxu0 0.0
    %145 = vmatpush1.msra.mxu0 0.0
    %146 = vmatprep.subr.mxu0 0.0
    %147 = vmatpush1.msra.mxu0 0.0
    %148 = vmatprep.subr.mxu0 0.0
    %149 = vmatpush1.msra.mxu0 0.0
    %150 = vmatprep.subr.mxu0 0.0
    %151 = vmatpush1.msra.mxu0 0.0
    %152 = vmatprep.subr.mxu0 0.0
    %153 = vmatpush1.msra.mxu0 0.0
    %154 = vmatprep.subr.mxu0 0.0
    %155 = vmatpush1.msra.mxu0 0.0
    %156 = vmatprep.subr.mxu0 0.0
    %157 = vmatpush1.msra.mxu0 0.0
    %158 = vmatprep.subr.mxu0 0.0
    %159 = vmatpush1.msra.mxu0 0.0
    %160 = vmatprep.subr.mxu0 0.0
    %161 = vmatpush1.msra.mxu0 0.0
    %162 = vmatprep.subr.mxu0 0.0
    %163 = vmatpush1.msra.mxu0 0.0
    %164 = vmatprep.subr.mxu0 0.0
    %165 = vmatpush1.msra.mxu0 0.0
    %166 = vmatprep.subr.mxu0 0.0
    %167 = vmatpush1.msra.mxu0 0.0
    %168 = vmatprep.subr.mxu0 0.0
    %169 = vmatpush1.msra.mxu0 0.0
    %170 = vmatprep.subr.mxu0 0.0
    %171 = vmatpush1.msra.mxu0 0.0
    %172 = vmatprep.subr.mxu0 0.0
    %173 = vmatpush1.msra.mxu0 0.0
    %174 = vmatprep.subr.mxu0 0.0
    %175 = vmatpush1.msra.mxu0 0.0
    %176 = vmatprep.mubr.f32.mxu0 0.0
    %177 = vmatmul.mubr.f32.gmra.mrb[0].mxu0 %v90
    %v178 = vpop.f32.mrb[0].mxu0
    %v179 = vadd.f32 %v111, %v178
    %v180 = vpop.f32.mrb[0].mxu0
    %181 = vdwg.mxu0
    %v182 = vmax.f32 %v179, 0.0
    %s183 = scalar_lea.vmem [#allocation2], 128
    %v184 = vld [vmem:[%s183] sm:$0xff]
    %v185 = vld [vmem:[%s183 + $0x8] sm:$0xff]
    %v186 = vld [vmem:[%s183 + $0x10] sm:$0xff]
    %v187 = vld [vmem:[%s183 + $0x18] sm:$0xff]
    %v188 = vld [vmem:[%s183 + $0x20] sm:$0xff]
    %v189 = vld [vmem:[%s183 + $0x28] sm:$0xff]
    %v190 = vld [vmem:[%s183 + $0x30] sm:$0xff]
    %v191 = vld [vmem:[%s183 + $0x38] sm:$0xff]
    %v192 = vld [vmem:[%s183 + $0x40] sm:$0xff]
    %v193 = vld [vmem:[%s183 + $0x48] sm:$0xff]
    %v194 = vld [vmem:[%s183 + $0x50] sm:$0xff]
    %v195 = vld [vmem:[%s183 + $0x58] sm:$0xff]
    %v196 = vld [vmem:[%s183 + $0x60] sm:$0xff]
    %v197 = vld [vmem:[%s183 + $0x68] sm:$0xff]
    %v198 = vld [vmem:[%s183 + $0x70] sm:$0xff]
    %v199 = vld [vmem:[%s183 + $0x78] sm:$0xff]
    %v200 = vlaneseq
    %v201 = vshrl.u32 %v200, 7
    %v202 = vsub.s32 1, %v201
    %v203 = vrot.slane %v91, %v202
    %204 = vmatprep.subr.mxu0 0.0
    %205 = vmatpush1.msra.mxu0 %v184
    %206 = vmatprep.subr.mxu0 0.0
    %207 = vmatpush1.msra.mxu0 %v185
    %208 = vmatprep.subr.mxu0 0.0
    %209 = vmatpush1.msra.mxu0 %v186
    %210 = vmatprep.subr.mxu0 0.0
    %211 = vmatpush1.msra.mxu0 %v187
    %212 = vmatprep.subr.mxu0 0.0
    %213 = vmatpush1.msra.mxu0 %v188
    %214 = vmatprep.subr.mxu0 0.0
    %215 = vmatpush1.msra.mxu0 %v189
    %216 = vmatprep.subr.mxu0 0.0
    %217 = vmatpush1.msra.mxu0 %v190
    %218 = vmatprep.subr.mxu0 0.0
    %219 = vmatpush1.msra.mxu0 %v191
    %220 = vmatprep.subr.mxu0 0.0
    %221 = vmatpush1.msra.mxu0 %v192
    %222 = vmatprep.subr.mxu0 0.0
    %223 = vmatpush1.msra.mxu0 %v193
    %224 = vmatprep.subr.mxu0 0.0
    %225 = vmatpush1.msra.mxu0 %v194
    %226 = vmatprep.subr.mxu0 0.0
    %227 = vmatpush1.msra.mxu0 %v195
    %228 = vmatprep.subr.mxu0 0.0
    %229 = vmatpush1.msra.mxu0 %v196
    %230 = vmatprep.subr.mxu0 0.0
    %231 = vmatpush1.msra.mxu0 %v197
    %232 = vmatprep.subr.mxu0 0.0
    %233 = vmatpush1.msra.mxu0 %v198
    %234 = vmatprep.subr.mxu0 0.0
    %235 = vmatpush1.msra.mxu0 %v199
    %236 = vmatprep.subr.mxu0 0.0
    %237 = vmatpush1.msra.mxu0 0.0
    %238 = vmatprep.subr.mxu0 0.0
    %239 = vmatpush1.msra.mxu0 0.0
    %240 = vmatprep.subr.mxu0 0.0
    %241 = vmatpush1.msra.mxu0 0.0
    %242 = vmatprep.subr.mxu0 0.0
    %243 = vmatpush1.msra.mxu0 0.0
    %244 = vmatprep.subr.mxu0 0.0
    %245 = vmatpush1.msra.mxu0 0.0
    %246 = vmatprep.subr.mxu0 0.0
    %247 = vmatpush1.msra.mxu0 0.0
    %248 = vmatprep.subr.mxu0 0.0
    %249 = vmatpush1.msra.mxu0 0.0
    %250 = vmatprep.subr.mxu0 0.0
    %251 = vmatpush1.msra.mxu0 0.0
    %252 = vmatprep.subr.mxu0 0.0
    %253 = vmatpush1.msra.mxu0 0.0
    %254 = vmatprep.subr.mxu0 0.0
    %255 = vmatpush1.msra.mxu0 0.0
    %256 = vmatprep.subr.mxu0 0.0
    %257 = vmatpush1.msra.mxu0 0.0
    %258 = vmatprep.subr.mxu0 0.0
    %259 = vmatpush1.msra.mxu0 0.0
    %260 = vmatprep.subr.mxu0 0.0
    %261 = vmatpush1.msra.mxu0 0.0
    %262 = vmatprep.subr.mxu0 0.0
    %263 = vmatpush1.msra.mxu0 0.0
    %264 = vmatprep.subr.mxu0 0.0
    %265 = vmatpush1.msra.mxu0 0.0
    %266 = vmatprep.subr.mxu0 0.0
    %267 = vmatpush1.msra.mxu0 0.0
    %268 = vmatprep.mubr.f32.mxu0 0.0
    %269 = vmatmul.mubr.f32.gmra.mrb[0].mxu0 %v182
    %v270 = vpop.f32.mrb[0].mxu0
    %v271 = vadd.f32 %v203, %v270
    %v272 = vpop.f32.mrb[0].mxu0
    %273 = vdwg.mxu0
    %v274 = vmax.f32 %v271, 0.0
    %s275 = scalar_lea.vmem [#allocation2], 256
    %v276 = vld [vmem:[%s275] sm:$0xff]
    %v277 = vld [vmem:[%s275 + $0x8] sm:$0xff]
    %v278 = vld [vmem:[%s275 + $0x10] sm:$0xff]
    %v279 = vld [vmem:[%s275 + $0x18] sm:$0xff]
    %v280 = vld [vmem:[%s275 + $0x20] sm:$0xff]
    %v281 = vld [vmem:[%s275 + $0x28] sm:$0xff]
    %v282 = vld [vmem:[%s275 + $0x30] sm:$0xff]
    %v283 = vld [vmem:[%s275 + $0x38] sm:$0xff]
    %v284 = vld [vmem:[%s275 + $0x40] sm:$0xff]
    %v285 = vld [vmem:[%s275 + $0x48] sm:$0xff]
    %v286 = vld [vmem:[%s275 + $0x50] sm:$0xff]
    %v287 = vld [vmem:[%s275 + $0x58] sm:$0xff]
    %v288 = vld [vmem:[%s275 + $0x60] sm:$0xff]
    %v289 = vld [vmem:[%s275 + $0x68] sm:$0xff]
    %v290 = vld [vmem:[%s275 + $0x70] sm:$0xff]
    %v291 = vld [vmem:[%s275 + $0x78] sm:$0xff]
    %v292 = vlaneseq
    %v293 = vshrl.u32 %v292, 7
    %v294 = vsub.s32 2, %v293
    %v295 = vrot.slane %v91, %v294
    %296 = vmatprep.subr.mxu0 0.0
    %297 = vmatpush1.msra.mxu0 %v276
    %298 = vmatprep.subr.mxu0 0.0
    %299 = vmatpush1.msra.mxu0 %v277
    %300 = vmatprep.subr.mxu0 0.0
    %301 = vmatpush1.msra.mxu0 %v278
    %302 = vmatprep.subr.mxu0 0.0
    %303 = vmatpush1.msra.mxu0 %v279
    %304 = vmatprep.subr.mxu0 0.0
    %305 = vmatpush1.msra.mxu0 %v280
    %306 = vmatprep.subr.mxu0 0.0
    %307 = vmatpush1.msra.mxu0 %v281
    %308 = vmatprep.subr.mxu0 0.0
    %309 = vmatpush1.msra.mxu0 %v282
    %310 = vmatprep.subr.mxu0 0.0
    %311 = vmatpush1.msra.mxu0 %v283
    %312 = vmatprep.subr.mxu0 0.0
    %313 = vmatpush1.msra.mxu0 %v284
    %314 = vmatprep.subr.mxu0 0.0
    %315 = vmatpush1.msra.mxu0 %v285
    %316 = vmatprep.subr.mxu0 0.0
    %317 = vmatpush1.msra.mxu0 %v286
    %318 = vmatprep.subr.mxu0 0.0
    %319 = vmatpush1.msra.mxu0 %v287
    %320 = vmatprep.subr.mxu0 0.0
    %321 = vmatpush1.msra.mxu0 %v288
    %322 = vmatprep.subr.mxu0 0.0
    %323 = vmatpush1.msra.mxu0 %v289
    %324 = vmatprep.subr.mxu0 0.0
    %325 = vmatpush1.msra.mxu0 %v290
    %326 = vmatprep.subr.mxu0 0.0
    %327 = vmatpush1.msra.mxu0 %v291
    %328 = vmatprep.subr.mxu0 0.0
    %329 = vmatpush1.msra.mxu0 0.0
    %330 = vmatprep.subr.mxu0 0.0
    %331 = vmatpush1.msra.mxu0 0.0
    %332 = vmatprep.subr.mxu0 0.0
    %333 = vmatpush1.msra.mxu0 0.0
    %334 = vmatprep.subr.mxu0 0.0
    %335 = vmatpush1.msra.mxu0 0.0
    %336 = vmatprep.subr.mxu0 0.0
    %337 = vmatpush1.msra.mxu0 0.0
    %338 = vmatprep.subr.mxu0 0.0
    %339 = vmatpush1.msra.mxu0 0.0
    %340 = vmatprep.subr.mxu0 0.0
    %341 = vmatpush1.msra.mxu0 0.0
    %342 = vmatprep.subr.mxu0 0.0
    %343 = vmatpush1.msra.mxu0 0.0
    %344 = vmatprep.subr.mxu0 0.0
    %345 = vmatpush1.msra.mxu0 0.0
    %346 = vmatprep.subr.mxu0 0.0
    %347 = vmatpush1.msra.mxu0 0.0
    %348 = vmatprep.subr.mxu0 0.0
    %349 = vmatpush1.msra.mxu0 0.0
    %350 = vmatprep.subr.mxu0 0.0
    %351 = vmatpush1.msra.mxu0 0.0
    %352 = vmatprep.subr.mxu0 0.0
    %353 = vmatpush1.msra.mxu0 0.0
    %354 = vmatprep.subr.mxu0 0.0
    %355 = vmatpush1.msra.mxu0 0.0
    %356 = vmatprep.subr.mxu0 0.0
    %357 = vmatpush1.msra.mxu0 0.0
    %358 = vmatprep.subr.mxu0 0.0
    %359 = vmatpush1.msra.mxu0 0.0
    %360 = vmatprep.mubr.f32.mxu0 0.0
    %361 = vmatmul.mubr.f32.gmra.mrb[0].mxu0 %v274
    %v362 = vpop.f32.mrb[0].mxu0
    %v363 = vadd.f32 %v295, %v362
    %v364 = vpop.f32.mrb[0].mxu0
    %365 = vdwg.mxu0
    %v366 = vmax.f32 %v363, 0.0
    %s367 = scalar_lea.vmem [#allocation2], 384
    %v368 = vld [vmem:[%s367] sm:$0xff]
    %v369 = vld [vmem:[%s367 + $0x8] sm:$0xff]
    %v370 = vld [vmem:[%s367 + $0x10] sm:$0xff]
    %v371 = vld [vmem:[%s367 + $0x18] sm:$0xff]
    %v372 = vld [vmem:[%s367 + $0x20] sm:$0xff]
    %v373 = vld [vmem:[%s367 + $0x28] sm:$0xff]
    %v374 = vld [vmem:[%s367 + $0x30] sm:$0xff]
    %v375 = vld [vmem:[%s367 + $0x38] sm:$0xff]
    %v376 = vld [vmem:[%s367 + $0x40] sm:$0xff]
    %v377 = vld [vmem:[%s367 + $0x48] sm:$0xff]
    %v378 = vld [vmem:[%s367 + $0x50] sm:$0xff]
    %v379 = vld [vmem:[%s367 + $0x58] sm:$0xff]
    %v380 = vld [vmem:[%s367 + $0x60] sm:$0xff]
    %v381 = vld [vmem:[%s367 + $0x68] sm:$0xff]
    %v382 = vld [vmem:[%s367 + $0x70] sm:$0xff]
    %v383 = vld [vmem:[%s367 + $0x78] sm:$0xff]
    %v384 = vlaneseq
    %v385 = vshrl.u32 %v384, 7
    %v386 = vsub.s32 3, %v385
    %v387 = vrot.slane %v91, %v386
    %388 = vmatprep.subr.mxu0 0.0
    %389 = vmatpush1.msra.mxu0 %v368
    %390 = vmatprep.subr.mxu0 0.0
    %391 = vmatpush1.msra.mxu0 %v369
    %392 = vmatprep.subr.mxu0 0.0
    %393 = vmatpush1.msra.mxu0 %v370
    %394 = vmatprep.subr.mxu0 0.0
    %395 = vmatpush1.msra.mxu0 %v371
    %396 = vmatprep.subr.mxu0 0.0
    %397 = vmatpush1.msra.mxu0 %v372
    %398 = vmatprep.subr.mxu0 0.0
    %399 = vmatpush1.msra.mxu0 %v373
    %400 = vmatprep.subr.mxu0 0.0
    %401 = vmatpush1.msra.mxu0 %v374
    %402 = vmatprep.subr.mxu0 0.0
    %403 = vmatpush1.msra.mxu0 %v375
    %404 = vmatprep.subr.mxu0 0.0
    %405 = vmatpush1.msra.mxu0 %v376
    %406 = vmatprep.subr.mxu0 0.0
    %407 = vmatpush1.msra.mxu0 %v377
    %408 = vmatprep.subr.mxu0 0.0
    %409 = vmatpush1.msra.mxu0 %v378
    %410 = vmatprep.subr.mxu0 0.0
    %411 = vmatpush1.msra.mxu0 %v379
    %412 = vmatprep.subr.mxu0 0.0
    %413 = vmatpush1.msra.mxu0 %v380
    %414 = vmatprep.subr.mxu0 0.0
    %415 = vmatpush1.msra.mxu0 %v381
    %416 = vmatprep.subr.mxu0 0.0
    %417 = vmatpush1.msra.mxu0 %v382
    %418 = vmatprep.subr.mxu0 0.0
    %419 = vmatpush1.msra.mxu0 %v383
    %420 = vmatprep.subr.mxu0 0.0
    %421 = vmatpush1.msra.mxu0 0.0
    %422 = vmatprep.subr.mxu0 0.0
    %423 = vmatpush1.msra.mxu0 0.0
    %424 = vmatprep.subr.mxu0 0.0
    %425 = vmatpush1.msra.mxu0 0.0
    %426 = vmatprep.subr.mxu0 0.0
    %427 = vmatpush1.msra.mxu0 0.0
    %428 = vmatprep.subr.mxu0 0.0
    %429 = vmatpush1.msra.mxu0 0.0
    %430 = vmatprep.subr.mxu0 0.0
    %431 = vmatpush1.msra.mxu0 0.0
    %432 = vmatprep.subr.mxu0 0.0
    %433 = vmatpush1.msra.mxu0 0.0
    %434 = vmatprep.subr.mxu0 0.0
    %435 = vmatpush1.msra.mxu0 0.0
    %436 = vmatprep.subr.mxu0 0.0
    %437 = vmatpush1.msra.mxu0 0.0
    %438 = vmatprep.subr.mxu0 0.0
    %439 = vmatpush1.msra.mxu0 0.0
    %440 = vmatprep.subr.mxu0 0.0
    %441 = vmatpush1.msra.mxu0 0.0
    %442 = vmatprep.subr.mxu0 0.0
    %443 = vmatpush1.msra.mxu0 0.0
    %444 = vmatprep.subr.mxu0 0.0
    %445 = vmatpush1.msra.mxu0 0.0
    %446 = vmatprep.subr.mxu0 0.0
    %447 = vmatpush1.msra.mxu0 0.0
    %448 = vmatprep.subr.mxu0 0.0
    %449 = vmatpush1.msra.mxu0 0.0
    %450 = vmatprep.subr.mxu0 0.0
    %451 = vmatpush1.msra.mxu0 0.0
    %452 = vmatprep.mubr.f32.mxu0 0.0
    %453 = vmatmul.mubr.f32.gmra.mrb[0].mxu0 %v366
    %v454 = vpop.f32.mrb[0].mxu0
    %v455 = vadd.f32 %v387, %v454
    %v456 = vpop.f32.mrb[0].mxu0
    %457 = vdwg.mxu0
    %v458 = vtanh.pop %v455
    %459 = vst [vmem:[%s4] sm:$0xff] %v458
    // Predicated region
    $region22: #{utility_predictor_forward.1} parent=1 // pred_check
      _
    $region23: #{utility_predictor_forward.1} parent=1 // pred_check_branch
      %461 = sbr.rel (0) target = $region25
    $region24: #{utility_predictor_forward.1} parent=1 // pred_region
      _
    $region25: #{utility_predictor_forward.1} parent=1 // pred_fallthru
      _
    // Predicated region
    $region26: #{utility_predictor_forward.1} parent=1 // pred_check
      _
    $region27: #{utility_predictor_forward.1} parent=1 // pred_check_branch
      %463 = sbr.rel (0) target = $region29
    $region28: #{utility_predictor_forward.1} parent=1 // pred_region
      _
    $region29: #{utility_predictor_forward.1} parent=1 // pred_fallthru
      _
    %464 = vsyncpa [#allocation3], 1

</llo_original>
